<compile_context>
chip_gen: v5e
topology: v5e:2x2
jax: 0.10.0
libtpu: 0.0.40
codegen_flags: <defaults>
</compile_context>

<pallas_src>
import jax
import jax.numpy as jnp
import numpy as np
from jax.experimental import pallas as pl
from jax.experimental.pallas import tpu as pltpu


def _first_argmax_keepdims(vals):
    """First-occurrence argmax along the last axis (matches torch .max(dim)[1]).

    Returns shape (..., 1) int32.
    Note: an all-NaN row would yield index == axis_size and a zero masked row;
    torch behaves differently in that degenerate case.  # TODO(synk): debug_check if needed.
    """
    n = vals.shape[-1]
    maxv = jnp.max(vals, axis=-1, keepdims=True)
    iota = jax.lax.broadcasted_iota(jnp.int32, vals.shape, vals.ndim - 1)
    cand = jnp.where(vals >= maxv, iota, jnp.int32(n))
    return jnp.min(cand, axis=-1, keepdims=True).astype(jnp.int32)


def _mask_cid_kernel(x_ref, masked_ref, idx_ref, classes_ref):
    x = x_ref[...].astype(jnp.float32)                 # in-kernel cast (free on VPU)
    tb, c, _ = x.shape
    # argmax on squared norm: sqrt is monotone -> identical indices, and the
    # sqrt only feeds the classes store, overlapping with the gather below.
    classes_sq = jnp.sum(x * x, axis=-1)               # (TB, C)
    cls_idx = _first_argmax_keepdims(classes_sq)       # (TB, 1)
    classes_ref[...] = jnp.sqrt(classes_sq)
    idx_ref[...] = cls_idx.reshape(1, tb)              # lane-dense (1, TB) store
    # gather the winning capsule per row via one-hot multiply + sublane reduce
    onehot = (jax.lax.broadcasted_iota(jnp.int32, (tb, c), 1) == cls_idx)
    masked_ref[...] = jnp.sum(x * onehot.astype(x.dtype)[:, :, None], axis=1)


def _mask_cid_kernel_target(x_ref, tgt_ref, masked_ref, idx_ref, classes_ref):
    x = x_ref[...].astype(jnp.float32)
    tb, c, _ = x.shape
    classes_sq = jnp.sum(x * x, axis=-1)               # (TB, C)
    cls_idx = _first_argmax_keepdims(classes_sq)       # returned indices = argmax(classes)
    classes_ref[...] = jnp.sqrt(classes_sq)
    idx_ref[...] = cls_idx.reshape(1, tb)
    sel_idx = _first_argmax_keepdims(tgt_ref[...])     # gather index = argmax(target)
    onehot = (jax.lax.broadcasted_iota(jnp.int32, (tb, c), 1) == sel_idx)
    masked_ref[...] = jnp.sum(x * onehot.astype(x.dtype)[:, :, None], axis=1)


def _choose_tiling(B, C, D, block_b, vmem_budget_bytes):
    """Pick a batch tile TB and the padded batch B_pad.

    Single block if B fits; otherwise TB is a multiple of 128 (so the (1, TB)
    index block tiles legally) and sized so the double-buffered x block stays
    well under the scoped-VMEM default on all chips (v7x has only 64 MiB VMEM).
    """
    if B <= block_b:
        return B, B
    # padded VMEM footprint per batch row of the x block (minor dims -> (8,128) tiles)
    sub = ((C + 7) // 8) * 8
    lane = ((D + 127) // 128) * 128
    per_row = 2 * sub * lane * 4                       # double-buffered, f32
    tb = min(block_b, max(128, vmem_budget_bytes // per_row))
    tb = max(128, (tb // 128) * 128)
    b_pad = ((B + tb - 1) // tb) * tb
    return tb, b_pad


def mask_cid(x, target=None, *, block_b=512, vmem_budget_bytes=8 << 20):
    """Pallas implementation of Mask_CID.forward.

    x:      (B, C, D)
    target: optional (B, C) score / one-hot tensor.
    Returns (masked (B,1,D) f32, indices (B,) i32, classes (B,C) f32).
    """
    B, C, D = x.shape
    TB, B_pad = _choose_tiling(B, C, D, block_b, vmem_budget_bytes)
    nb = B_pad // TB

    x_in, tgt_in = x, target
    if B_pad != B:
        x_in = jnp.pad(x, ((0, B_pad - B), (0, 0), (0, 0)))
        if target is not None:
            tgt_in = jnp.pad(target, ((0, B_pad - B), (0, 0)))

    out_shape = (
        jax.ShapeDtypeStruct((B_pad, D), jnp.float32),   # masked (size-1 axis dropped)
        jax.ShapeDtypeStruct((1, B_pad), jnp.int32),     # indices, batch on lanes
        jax.ShapeDtypeStruct((B_pad, C), jnp.float32),   # classes
    )
    out_specs = [
        pl.BlockSpec((TB, D), lambda i: (i, 0)),
        pl.BlockSpec((1, TB), lambda i: (0, i)),
        pl.BlockSpec((TB, C), lambda i: (i, 0)),
    ]

    x_bytes = B_pad * C * D * jnp.dtype(x.dtype).itemsize
    out_bytes = B_pad * D * 4 + B_pad * 4 + B_pad * C * 4
    extra_bytes = 0 if target is None else B_pad * C * jnp.dtype(tgt_in.dtype).itemsize
    cost = pl.CostEstimate(
        flops=3 * B_pad * C * D,
        transcendentals=B_pad * C,
        bytes_accessed=int(x_bytes + out_bytes + extra_bytes),
    )

    if target is None:
        kernel = _mask_cid_kernel
        in_specs = [pl.BlockSpec((TB, C, D), lambda i: (i, 0, 0))]
        args = (x_in,)
    else:
        kernel = _mask_cid_kernel_target
        in_specs = [
            pl.BlockSpec((TB, C, D), lambda i: (i, 0, 0)),
            pl.BlockSpec((TB, C), lambda i: (i, 0)),
        ]
        args = (x_in, tgt_in)

    masked2d, idx_row, classes = pl.pallas_call(
        kernel,
        grid=(nb,),
        in_specs=in_specs,
        out_specs=out_specs,
        out_shape=out_shape,
        compiler_params=pltpu.CompilerParams(dimension_semantics=("parallel",)),
        cost_estimate=cost,
    )(*args)

    masked = masked2d[:B].reshape(B, 1, D)
    indices = idx_row[0, :B]
    classes = classes[:B]
    return masked, indices, classes


def _reference(x, target=None):
    classes = jnp.linalg.norm(x, axis=2)
    cls_idx = jnp.argmax(classes, axis=-1)
    sel_idx = cls_idx if target is None else jnp.argmax(target, axis=-1)
    masked = x[jnp.arange(x.shape[0]), sel_idx][:, None, :]
    return masked, cls_idx, classes


if __name__ == "__main__":
    key = jax.random.PRNGKey(0)
    kx, kt, kx2, kt2 = jax.random.split(key, 4)

    # Small shapes implied by the module: batch=2, num_capsules=4, capsule_dim=16.
    B, C, D = 2, 4, 16
    x = jax.random.normal(kx, (B, C, D), dtype=jnp.float32)
    target = jax.nn.one_hot(jax.random.randint(kt, (B,), 0, C), C, dtype=jnp.float32)

    # target=None path
    masked, idx, classes = jax.block_until_ready(mask_cid(x))
    r_masked, r_idx, r_classes = _reference(x)
    assert masked.shape == (B, 1, D) and idx.shape == (B,) and classes.shape == (B, C)
    assert np.allclose(np.asarray(masked), np.asarray(r_masked), atol=1e-5)
    assert np.array_equal(np.asarray(idx), np.asarray(r_idx))
    assert np.allclose(np.asarray(classes), np.asarray(r_classes), atol=1e-5)

    # target path
    masked_t, idx_t, classes_t = jax.block_until_ready(mask_cid(x, target))
    r_masked_t, r_idx_t, r_classes_t = _reference(x, target)
    assert np.allclose(np.asarray(masked_t), np.asarray(r_masked_t), atol=1e-5)
    assert np.array_equal(np.asarray(idx_t), np.asarray(r_idx_t))
    assert np.allclose(np.asarray(classes_t), np.asarray(r_classes_t), atol=1e-5)

    # Larger batch exercising the tiled (grid > 1) + padded path.
    B2 = 600
    x2 = jax.random.normal(kx2, (B2, C, D), dtype=jnp.float32)
    target2 = jax.nn.one_hot(jax.random.randint(kt2, (B2,), 0, C), C, dtype=jnp.float32)
    m2, i2, c2 = jax.block_until_ready(mask_cid(x2))
    rm2, ri2, rc2 = _reference(x2)
    assert np.allclose(np.asarray(m2), np.asarray(rm2), atol=1e-5)
    assert np.array_equal(np.asarray(i2), np.asarray(ri2))
    assert np.allclose(np.asarray(c2), np.asarray(rc2), atol=1e-5)
    m2t, i2t, c2t = jax.block_until_ready(mask_cid(x2, target2))
    rm2t, ri2t, rc2t = _reference(x2, target2)
    assert np.allclose(np.asarray(m2t), np.asarray(rm2t), atol=1e-5)
    assert np.array_equal(np.asarray(i2t), np.asarray(ri2t))

    print("KERNEL_OK")
</pallas_src>

<mosaic_0001>
module attributes {stable_mosaic.version = 11 : i64} {
  func.func @_mask_cid_kernel(%arg0: i32, %arg1: memref<2x4x16xf32, #tpu.memory_space<vmem>>, %arg2: memref<2x16xf32, #tpu.memory_space<vmem>>, %arg3: memref<1x2xi32, #tpu.memory_space<vmem>>, %arg4: memref<2x4xf32, #tpu.memory_space<vmem>>) attributes {dimension_semantics = [#tpu.dimension_semantics<parallel>], iteration_bounds = array<i64: 1>, scalar_prefetch = 0 : i64, scratch_operands = 0 : i64, tpu.core_type = #tpu.core_type<tc>, window_params = [{transform_indices = @transform_0, window_bounds = array<i64: 2, 4, 16>}, {transform_indices = @transform_1, window_bounds = array<i64: 2, 16>}, {transform_indices = @transform_2, window_bounds = array<i64: 1, 2>}, {transform_indices = @transform_3, window_bounds = array<i64: 2, 4>}]} {
    %c0 = arith.constant 0 : index
    %c0_0 = arith.constant 0 : index
    %c0_1 = arith.constant 0 : index
    %0 = vector.load %arg1[%c0, %c0_0, %c0_1] : memref<2x4x16xf32, #tpu.memory_space<vmem>>, vector<2x4x16xf32>
    %1 = arith.mulf %0, %0 : vector<2x4x16xf32>
    %cst = arith.constant dense<0.000000e+00> : vector<2x4xf32>
    %2 = vector.multi_reduction <add>, %1, %cst [2] : vector<2x4x16xf32> to vector<2x4xf32>
    %cst_2 = arith.constant dense<0xFF800000> : vector<2xf32>
    %3 = vector.multi_reduction <maximumf>, %2, %cst_2 [1] : vector<2x4xf32> to vector<2xf32>
    %4 = vector.shape_cast %3 : vector<2xf32> to vector<2x1xf32>
    %5 = tpu.iota {dimensions = array<i32: 1>} : vector<2x4xi32>
    %6 = vector.broadcast %4 : vector<2x1xf32> to vector<2x4xf32>
    %7 = arith.cmpf oge, %2, %6 : vector<2x4xf32>
    %c4_i32 = arith.constant 4 : i32
    %8 = vector.broadcast %c4_i32 : i32 to vector<2x4xi32>
    %9 = arith.select %7, %5, %8 : vector<2x4xi1>, vector<2x4xi32>
    %cst_3 = arith.constant dense<2147483647> : vector<2xi32>
    %10 = vector.multi_reduction <minsi>, %9, %cst_3 [1] : vector<2x4xi32> to vector<2xi32>
    %11 = vector.shape_cast %10 : vector<2xi32> to vector<2x1xi32>
    %12 = math.sqrt %2 : vector<2x4xf32>
    %c0_4 = arith.constant 0 : index
    %c0_5 = arith.constant 0 : index
    %13 = vector.load %arg4[%c0_4, %c0_5] : memref<2x4xf32, #tpu.memory_space<vmem>>, vector<2x4xf32>
    tpu.vector_store %arg4[%c0_4, %c0_5], %12 {strides = array<i32>} : memref<2x4xf32, #tpu.memory_space<vmem>>, vector<2x4xf32>,
    %14 = vector.shape_cast %11 : vector<2x1xi32> to vector<1x2xi32>
    %c0_6 = arith.constant 0 : index
    %c0_7 = arith.constant 0 : index
    %15 = vector.load %arg3[%c0_6, %c0_7] : memref<1x2xi32, #tpu.memory_space<vmem>>, vector<1x2xi32>
    tpu.vector_store %arg3[%c0_6, %c0_7], %14 {strides = array<i32>} : memref<1x2xi32, #tpu.memory_space<vmem>>, vector<1x2xi32>,
    %16 = tpu.iota {dimensions = array<i32: 1>} : vector<2x4xi32>
    %17 = vector.broadcast %11 : vector<2x1xi32> to vector<2x4xi32>
    %18 = arith.cmpi eq, %16, %17 : vector<2x4xi32>
    %19 = arith.extui %18 : vector<2x4xi1> to vector<2x4xi32>
    %20 = arith.sitofp %19 : vector<2x4xi32> to vector<2x4xf32>
    %21 = vector.shape_cast %20 : vector<2x4xf32> to vector<2x4x1xf32>
    %22 = vector.broadcast %21 : vector<2x4x1xf32> to vector<2x4x16xf32>
    %23 = arith.mulf %0, %22 : vector<2x4x16xf32>
    %cst_8 = arith.constant dense<0.000000e+00> : vector<2x16xf32>
    %24 = vector.multi_reduction <add>, %23, %cst_8 [1] : vector<2x4x16xf32> to vector<2x16xf32>
    %c0_9 = arith.constant 0 : index
    %c0_10 = arith.constant 0 : index
    %25 = vector.load %arg2[%c0_9, %c0_10] : memref<2x16xf32, #tpu.memory_space<vmem>>, vector<2x16xf32>
    tpu.vector_store %arg2[%c0_9, %c0_10], %24 {strides = array<i32>} : memref<2x16xf32, #tpu.memory_space<vmem>>, vector<2x16xf32>,
    return
  }
  func.func @transform_0(%arg0: i32) -> (i32, i32, i32) {
    %c0_i32 = arith.constant 0 : i32
    %c0_i32_0 = arith.constant 0 : i32
    %c0_i32_1 = arith.constant 0 : i32
    return %arg0, %c0_i32, %c0_i32_0 : i32, i32, i32
  }
  func.func @transform_1(%arg0: i32) -> (i32, i32) {
    %c0_i32 = arith.constant 0 : i32
    %c0_i32_0 = arith.constant 0 : i32
    return %arg0, %c0_i32 : i32, i32
  }
  func.func @transform_2(%arg0: i32) -> (i32, i32) {
    %c0_i32 = arith.constant 0 : i32
    %c0_i32_0 = arith.constant 0 : i32
    return %c0_i32, %arg0 : i32, i32
  }
  func.func @transform_3(%arg0: i32) -> (i32, i32) {
    %c0_i32 = arith.constant 0 : i32
    %c0_i32_0 = arith.constant 0 : i32
    return %arg0, %c0_i32 : i32, i32
  }
}

</mosaic_0001>

<llo_original>
// kernel: tpu_custom_call.1
$region0: #{tpu_custom_call.1}
  #allocation0 [shape = 'u32[]', space=smem, size = 0x4, offset = 0x4, fixed_abs, tag = 'smem constant byte address 0x4 - core index']
  #allocation1 [shape = 'u32[72,128]{1,0:T(1,128)}', space=vmem, size = 0x9000, scoped, tag = 'internal scratch']
  %s0 = inlined_call_operand.hbm [shape: f32[2,4,16], index: 0, kind: input, shape index: {}]
  %s1 = inlined_call_operand.hbm [shape: f32[2,16], index: 1, kind: output, shape index: {0}]
  %s2 = inlined_call_operand.hbm [shape: s32[1,2], index: 2, kind: output, shape index: {1}]
  %s3 = inlined_call_operand.hbm [shape: f32[2,4], index: 3, kind: output, shape index: {2}]
  %4 = xla_tuple %s1, %s2, %s3
  %s5 = sld [smem:[#allocation0]]
  $region34: #{tpu_custom_call.1} parent=0
    _
  %s7 = ssub.s32 1, %s5
  %s8 = scalar_select 0, %s7, %s5
  $region1: #{tpu_custom_call.1} parent=0
    #allocation2 [shape = 'u8[4096]{0}', space=vmem, size = 0x1000, scoped, tag = 'input window, operand 0, single buffered']
    #allocation3 [shape = 's32[1]{0}', space=sflag, size = 0x4, scoped, tag = 'scoped memory for tpu_custom_call.1']
    #allocation4 [shape = 's32[1]{0}', space=sflag, size = 0x4, scoped, tag = 'scoped memory for tpu_custom_call.1']
    #allocation5 [shape = 'u8[1024]{0}', space=vmem, size = 0x400, scoped, tag = 'output window, operand 0, single buffered']
    #allocation6 [shape = 'u8[512]{0}', space=vmem, size = 0x400, scoped, tag = 'output window, operand 1, single buffered']
    #allocation7 [shape = 's32[1]{0}', space=sflag, size = 0x4, scoped, tag = 'scoped memory for tpu_custom_call.1']
    #allocation8 [shape = 'u8[1024]{0}', space=vmem, size = 0x400, scoped, tag = 'output window, operand 2, single buffered']
    %9 = vsyncpa [#allocation3], 0
    %10 = vsyncpa [#allocation4], 0
    %11 = vsyncpa [#allocation7], 0
    // Predicated region
    $region2: #{tpu_custom_call.1} parent=1 // pred_check
      _
    $region3: #{tpu_custom_call.1} parent=1 // pred_check_branch
      %13 = sbr.rel (0) target = $region5
    $region4: #{tpu_custom_call.1} parent=1 // pred_region
      %15 = vsyncadd [#allocation3], 0
      %s16 = sshll.u32 %s0, 4
      %s17 = int_to_ptr.hbm [resolvable:$true] %s16
      %s18 = sshll.u32 [#allocation2], 4
      %s19 = int_to_ptr.vmem [resolvable:$true] %s18
      %24 = dma.hbm_to_vmem [thread:$0]  %s17, 128, %s19, [#allocation3], 64, 64, 4
    $region5: #{tpu_custom_call.1} parent=1 // pred_fallthru
      _
    // Predicated region
    $region6: #{tpu_custom_call.1} parent=1 // pred_check
      _
    $region7: #{tpu_custom_call.1} parent=1 // pred_check_branch
      %26 = sbr.rel (0) target = $region9
    $region8: #{tpu_custom_call.1} parent=1 // pred_region
      %28 = dma.done [#allocation3], 128
    $region9: #{tpu_custom_call.1} parent=1 // pred_fallthru
      _
    %v29 = vld [vmem:[#allocation2] sm:$0xf]
    %v30 = vld [vmem:[#allocation2 + $0x4] sm:$0xf]
    %v31 = vmul.f32 %v29, %v29
    %v32 = vmul.f32 %v30, %v30
    %vm33 = vcmask 125952
    %v34 = vsel %vm33, %v31, 0.0
    %35 = vadd.xlane.f32.xlu0 %v34
    %v36 = vpop.xlane.xlu0 %35
    %v37 = vsel %vm33, %v32, 0.0
    %38 = vadd.xlane.f32.xlu0 %v37
    %v39 = vpop.xlane.xlu0 %38
    %v42 = vlaneseq
    %v43 = vand.u32 %v42, 127
    %v44 = vperm.slane %v36, %v43
    %v45 = vperm.slane %v39, %v43
    %vm46 = vcmask 1041409
    %v47 = vsel %vm46, %v45, %v44
    %vm49 = vcmask 25600
    %v50 = vsel %vm49, %v47, -inf
    %51 = vmax.xlane.f32.xlu0 %v50
    %v52 = vpop.xlane.xlu0 %51
    %v54 = vperm.slane %v52, 0
    %v55 = vperm.slane %v52, 1
    %vm58 = vcmp.ge.f32.partialorder %v36, %v54
    %vm59 = vcmp.ge.f32.partialorder %v39, %v55
    %v60 = vlaneseq
    %v61 = vshrl.u32 %v60, 7
    %63 = vset.pattern.permute.xlu0 %v61
    %64 = vperm.xlu0 %63, %v43
    %v65 = vpop.permute.xlu0 %64
    %v66 = vsel %vm58, %v65, 4
    %v67 = vsel %vm59, %v65, 4
    %68 = vset.pattern.permute.xlu0 0
    %69 = vperm.xlu0 %68, %v66
    %v70 = vpop.permute.xlu0 %69
    %71 = vset.pattern.permute.xlu0 0
    %72 = vperm.xlu0 %71, %v67
    %v73 = vpop.permute.xlu0 %72
    %v74 = vperm.slane %v70, %v43
    %v75 = vperm.slane %v73, %v43
    %v76 = vsel %vm46, %v75, %v74
    %v77 = vsel %vm49, %v76, 2147483647
    %v78 = vand.u32 %v77, 65535
    %v79 = vshra.s32 %v77, 16
    %v80 = vcvt.s32.f32 %v78
    %v81 = vcvt.s32.f32 %v79
    %82 = vmin.xlane.f32.xlu0 %v81
    %v83 = vpop.xlane.xlu0 %82
    %vm84 = vcmp.eq.f32.partialorder %v81, %v83
    %v85 = vsel %vm84, %v80, inf
    %86 = vmin.xlane.f32.xlu0 %v85
    %v87 = vpop.xlane.xlu0 %86
    %v88 = vcvt.f32.s32 %v87
    %v89 = vcvt.f32.s32 %v83
    %v90 = vshll.u32 %v89, 16
    %v91 = vadd.s32 %v90, %v88
    %v92 = vrsqrt.pop %v36
    %v93 = vmul.f32 %v92, %v36
    %v94 = vmul.f32 %v93, %v92
    %v95 = vmul.f32 0.5, %v94
    %v96 = vsub.f32 1.5, %v95
    %v97 = vmul.f32 %v92, %v96
    %v98 = vmul.f32 %v36, %v97
    %vm99 = vcmp.eq.f32.partialorder %v36, inf
    %v100 = vsel %vm99, %v36, %v98
    %vm101 = vcmp.eq.f32.partialorder %v36, 0.0
    %v102 = vand.u32 %v36, 2147483648
    %v103 = vsel %vm101, %v102, %v100
    %v104 = vrsqrt.pop %v39
    %v105 = vmul.f32 %v104, %v39
    %v106 = vmul.f32 %v105, %v104
    %v107 = vmul.f32 0.5, %v106
    %v108 = vsub.f32 1.5, %v107
    %v109 = vmul.f32 %v104, %v108
    %v110 = vmul.f32 %v39, %v109
    %vm111 = vcmp.eq.f32.partialorder %v39, inf
    %v112 = vsel %vm111, %v39, %v110
    %vm113 = vcmp.eq.f32.partialorder %v39, 0.0
    %v114 = vand.u32 %v39, 2147483648
    %v115 = vsel %vm113, %v114, %v112
    %v118 = vperm.slane %v103, %v43
    %v119 = vperm.slane %v115, %v43
    %v120 = vsel %vm46, %v119, %v118
    %122 = vst.msk [vmem:[#allocation8] sm:$0x3] %vm49, %v120
    %v123 = vperm.slane %v91, %v43
    %vm124 = vcmask 8192
    %125 = vst.msk [vmem:[#allocation6] sm:$0x1] %vm124, %v123
    %vm126 = vcmp.eq.s32.totalorder %v43, %v91
    %v127 = vsel %vm126, 1, 0
    %v128 = vcvt.s32.f32 %v127
    %v129 = vperm.slane %v128, 0
    %v130 = vlaneseq
    %v131 = vshrl.u32 %v130, 7
    %133 = vset.pattern.permute.xlu0 %v131
    %134 = vperm.xlu0 %133, %v129
    %v135 = vpop.permute.xlu0 %134
    %v136 = vperm.slane %v128, 1
    %v137 = vlaneseq
    %v138 = vshrl.u32 %v137, 7
    %140 = vset.pattern.permute.xlu0 %v138
    %141 = vperm.xlu0 %140, %v136
    %v142 = vpop.permute.xlu0 %141
    %v143 = vmul.f32 %v29, %v135
    %v144 = vmul.f32 %v30, %v142
    %v145 = vsel %vm33, %v143, 0.0
    %v146 = vrot.slane %v145, 4
    %v147 = vadd.f32 %v145, %v146
    %v148 = vrot.slane %v147, 2
    %v149 = vadd.f32 %v147, %v148
    %v150 = vrot.slane %v149, 1
    %v151 = vadd.f32 %v149, %v150
    %v152 = vsel %vm33, %v144, 0.0
    %v153 = vrot.slane %v152, 4
    %v154 = vadd.f32 %v152, %v153
    %v155 = vrot.slane %v154, 2
    %v156 = vadd.f32 %v154, %v155
    %v157 = vrot.slane %v156, 1
    %v158 = vadd.f32 %v156, %v157
    %v161 = vsel %vm46, %v158, %v151
    %vm163 = vcmask 123904
    %164 = vst.msk [vmem:[#allocation5] sm:$0x3] %vm163, %v161
    // Predicated region
    $region10: #{tpu_custom_call.1} parent=1 // pred_check
      _
    $region11: #{tpu_custom_call.1} parent=1 // pred_check_branch
      %166 = sbr.rel (0) target = $region13
    $region12: #{tpu_custom_call.1} parent=1 // pred_region
      %168 = vsyncadd [#allocation4], 0
      %s170 = sshll.u32 [#allocation5], 4
      %s171 = int_to_ptr.vmem [resolvable:$true] %s170
      %s172 = sshll.u32 %s1, 4
      %s173 = int_to_ptr.hbm [resolvable:$true] %s172
      %175 = dma.vmem_to_hbm [thread:$0]  %s171, 32, %s173, [#allocation4]
    $region13: #{tpu_custom_call.1} parent=1 // pred_fallthru
      _
    // Predicated region
    $region14: #{tpu_custom_call.1} parent=1 // pred_check
      _
    $region15: #{tpu_custom_call.1} parent=1 // pred_check_branch
      %177 = sbr.rel (0) target = $region17
    $region16: #{tpu_custom_call.1} parent=1 // pred_region
      %179 = vsyncadd [#allocation7], 0
      %s181 = sshll.u32 [#allocation6], 4
      %s182 = int_to_ptr.vmem [resolvable:$true] %s181
      %s183 = sshll.u32 %s2, 4
      %s184 = int_to_ptr.hbm [resolvable:$true] %s183
      %186 = dma.vmem_to_hbm [thread:$0]  %s182, 16, %s184, [#allocation7]
    $region17: #{tpu_custom_call.1} parent=1 // pred_fallthru
      _
    // Predicated region
    $region18: #{tpu_custom_call.1} parent=1 // pred_check
      _
    $region19: #{tpu_custom_call.1} parent=1 // pred_check_branch
      %188 = sbr.rel (0) target = $region21
    $region20: #{tpu_custom_call.1} parent=1 // pred_region
      %190 = vsyncadd [#allocation7], 0
      %s192 = sshll.u32 [#allocation8], 4
      %s193 = int_to_ptr.vmem [resolvable:$true] %s192
      %s194 = sshll.u32 %s3, 4
      %s195 = int_to_ptr.hbm [resolvable:$true] %s194
      %197 = dma.vmem_to_hbm [thread:$0]  %s193, 32, %s195, [#allocation7]
    $region21: #{tpu_custom_call.1} parent=1 // pred_fallthru
      _
    // Predicated region
    $region22: #{tpu_custom_call.1} parent=1 // pred_check
      _
    $region23: #{tpu_custom_call.1} parent=1 // pred_check_branch
      %199 = sbr.rel (0) target = $region25
    $region24: #{tpu_custom_call.1} parent=1 // pred_region
      %201 = dma.done [#allocation4], 32
    $region25: #{tpu_custom_call.1} parent=1 // pred_fallthru
      _
    // Predicated region
    $region26: #{tpu_custom_call.1} parent=1 // pred_check
      _
    $region27: #{tpu_custom_call.1} parent=1 // pred_check_branch
      %203 = sbr.rel (0) target = $region29
    $region28: #{tpu_custom_call.1} parent=1 // pred_region
      %205 = dma.done [#allocation7], 16
    $region29: #{tpu_custom_call.1} parent=1 // pred_fallthru
      _
    // Predicated region
    $region30: #{tpu_custom_call.1} parent=1 // pred_check
      _
    $region31: #{tpu_custom_call.1} parent=1 // pred_check_branch
      %207 = sbr.rel (0) target = $region33
    $region32: #{tpu_custom_call.1} parent=1 // pred_region
      %209 = dma.done [#allocation7], 32
    $region33: #{tpu_custom_call.1} parent=1 // pred_fallthru
      _
    %210 = vsyncpa [#allocation3], 1
    %211 = vsyncpa [#allocation4], 1
    %212 = vsyncpa [#allocation7], 1

</llo_original>
